<compile_context>
chip_gen: v5e
topology: v5e:2x2
jax: 0.10.0
libtpu: 0.0.40
codegen_flags: <defaults>
</compile_context>

<pallas_src>
import functools

import jax
import jax.numpy as jnp
from jax import lax
from jax.experimental import pallas as pl
from jax.experimental.pallas import tpu as pltpu

LANE = 128


def _custom_mse_block_kernel(x_ref, t_ref, out_ref, *, lambda_nz, rows,
                             block_rows):
    """One grid step: reduce one (block_rows, 128) tile to a scalar partial sum.

    partial = sum over tile of  where(t == 0, lambda_nz * x^2, (x - t)^2)
    (which equals (x - t)^2 everywhere when lambda_nz == 1, since t == 0 there).
    """
    t_native = t_ref[...]                       # zero test in native precision
    x = x_ref[...].astype(jnp.float32)
    t = t_native.astype(jnp.float32)
    diff = x - t

    if lambda_nz == 1.0:                        # plain MSE: no compare/select
        contrib = diff * diff
    else:
        zero_cells = t_native == 0
        if lambda_nz == 0.0:                    # only the nonzero-target term
            contrib = jnp.where(zero_cells, jnp.float32(0.0), diff * diff)
        else:
            contrib = jnp.where(zero_cells,
                                jnp.float32(lambda_nz) * (x * x),
                                diff * diff)

    # Ragged tail block: rows beyond the array are undefined data -> mask them.
    if rows % block_rows != 0:
        i = pl.program_id(0)
        local_row = lax.broadcasted_iota(jnp.int32, contrib.shape, 0)
        valid = local_row < (rows - i * block_rows)
        contrib = jnp.where(valid, contrib, jnp.float32(0.0))

    out_ref[0, 0] = jnp.sum(contrib)


def custom_mse_loss(inp, target, lambda_nz, block_rows=2048):
    """Pallas implementation of CustomMSELoss(lambda_nz)(inp, target)."""
    assert inp.shape == target.shape, "input and target must have the same shape"
    n = int(inp.size)

    x = inp.reshape(-1)            # native dtype, no upcast copy
    t = target.reshape(-1)

    # Minimal tail pad only when n is not a multiple of 128; padded cells have
    # x = 0, t = 0 and contribute exactly 0 to the partial sums.
    pad = (-n) % LANE
    if pad:
        x = jnp.pad(x, (0, pad))
        t = jnp.pad(t, (0, pad))

    rows = (n + pad) // LANE
    x2 = x.reshape(rows, LANE)
    t2 = t.reshape(rows, LANE)

    # Block rows: multiple of 8 (2048 default) or the full row extent when the
    # array is smaller than one block -- both satisfy the (8, 128) rule.
    br = min(block_rows, rows)
    num_blocks = pl.cdiv(rows, br)

    kernel = functools.partial(_custom_mse_block_kernel,
                               lambda_nz=float(lambda_nz),
                               rows=rows,
                               block_rows=br)

    partials = pl.pallas_call(
        kernel,
        out_shape=jax.ShapeDtypeStruct((num_blocks, 1), jnp.float32),
        grid_spec=pltpu.PrefetchScalarGridSpec(
            num_scalar_prefetch=0,
            grid=(num_blocks,),
            in_specs=[
                pl.BlockSpec((br, LANE), lambda i: (i, 0)),
                pl.BlockSpec((br, LANE), lambda i: (i, 0)),
            ],
            out_specs=pl.BlockSpec((1, 1), lambda i: (i, 0),
                                   memory_space=pltpu.SMEM),
        ),
        compiler_params=pltpu.CompilerParams(
            dimension_semantics=("parallel",)),
    )(x2, t2)

    # nn.MSELoss averages over ALL elements; lambda weighting is already folded
    # into the per-block partial sums.
    return jnp.sum(partials) / jnp.float32(n)


def _reference_loss(x, t, lam):
    """Pure-JAX mirror of the PyTorch forward (zero test in native dtype,
    arithmetic in f32, mean over all elements)."""
    zero = t == 0
    xf = x.astype(jnp.float32)
    tf = t.astype(jnp.float32)
    if lam == 1:
        return jnp.mean((xf - tf) ** 2)
    loss_nonzero = jnp.mean(jnp.where(zero, 0.0, (xf - tf) ** 2))
    if lam == 0:
        return loss_nonzero
    loss_zero = jnp.mean(jnp.where(zero, xf * xf, 0.0))
    return loss_nonzero + lam * loss_zero


if __name__ == "__main__":
    key = jax.random.PRNGKey(0)
    k1, k2, k3 = jax.random.split(key, 3)

    # Small NCHW tensors, target has ~50% exact zeros.
    shape = (2, 4, 16, 16)
    inp = jax.random.normal(k1, shape, dtype=jnp.float32)
    t_vals = jax.random.normal(k2, shape, dtype=jnp.float32)
    t_mask = jax.random.bernoulli(k3, p=0.5, shape=shape)
    target = jnp.where(t_mask, t_vals, jnp.float32(0.0))

    for lam in (0.5, 0.0, 1.0):
        got = jax.block_until_ready(custom_mse_loss(inp, target, lam))
        want = _reference_loss(inp, target, lam)
        assert jnp.allclose(got, want, rtol=1e-5, atol=1e-6), (lam, got, want)

    # bf16 inputs flow through the kernel in native dtype (no wrapper upcast).
    inp_bf = inp.astype(jnp.bfloat16)
    tgt_bf = target.astype(jnp.bfloat16)
    got = jax.block_until_ready(custom_mse_loss(inp_bf, tgt_bf, 0.5))
    want = _reference_loss(inp_bf, tgt_bf, 0.5)
    assert jnp.allclose(got, want, rtol=1e-4, atol=1e-5), (got, want)

    # Ragged grid (rows % block_rows != 0) exercises the in-kernel tail mask.
    shape2 = (1, 1, 20, 128)
    inp2 = jax.random.normal(k1, shape2, dtype=jnp.float32)
    tv2 = jax.random.normal(k2, shape2, dtype=jnp.float32)
    tm2 = jax.random.bernoulli(k3, p=0.5, shape=shape2)
    tgt2 = jnp.where(tm2, tv2, jnp.float32(0.0))
    got = jax.block_until_ready(custom_mse_loss(inp2, tgt2, 0.5, block_rows=8))
    want = _reference_loss(inp2, tgt2, 0.5)
    assert jnp.allclose(got, want, rtol=1e-5, atol=1e-6), (got, want)

    # Element count not divisible by 128 exercises the minimal tail-pad path.
    shape3 = (2, 3, 5, 7)
    inp3 = jax.random.normal(k1, shape3, dtype=jnp.float32)
    tv3 = jax.random.normal(k2, shape3, dtype=jnp.float32)
    tm3 = jax.random.bernoulli(k3, p=0.5, shape=shape3)
    tgt3 = jnp.where(tm3, tv3, jnp.float32(0.0))
    got = jax.block_until_ready(custom_mse_loss(inp3, tgt3, 0.5))
    want = _reference_loss(inp3, tgt3, 0.5)
    assert jnp.allclose(got, want, rtol=1e-5, atol=1e-6), (got, want)

    print("KERNEL_OK")
</pallas_src>

<mosaic_0001>
module attributes {stable_mosaic.version = 11 : i64} {
  func.func @_custom_mse_block_kernel(%arg0: i32, %arg1: memref<16x128xf32, #tpu.memory_space<vmem>>, %arg2: memref<16x128xf32, #tpu.memory_space<vmem>>, %arg3: memref<1x1xf32, #tpu.memory_space<smem>>) attributes {dimension_semantics = [#tpu.dimension_semantics<parallel>], iteration_bounds = array<i64: 1>, scalar_prefetch = 0 : i64, scratch_operands = 0 : i64, tpu.core_type = #tpu.core_type<tc>, window_params = [{transform_indices = @transform_0, window_bounds = array<i64: 16, 128>}, {transform_indices = @transform_1, window_bounds = array<i64: 16, 128>}, {transform_indices = @transform_2, window_bounds = array<i64: 1, 1>}]} {
    %c0 = arith.constant 0 : index
    %c0_0 = arith.constant 0 : index
    %0 = vector.load %arg2[%c0, %c0_0] : memref<16x128xf32, #tpu.memory_space<vmem>>, vector<16x128xf32>
    %c0_1 = arith.constant 0 : index
    %c0_2 = arith.constant 0 : index
    %1 = vector.load %arg1[%c0_1, %c0_2] : memref<16x128xf32, #tpu.memory_space<vmem>>, vector<16x128xf32>
    %2 = arith.subf %1, %0 : vector<16x128xf32>
    %cst = arith.constant 0.000000e+00 : f32
    %3 = vector.broadcast %cst : f32 to vector<16x128xf32>
    %4 = arith.cmpf oeq, %0, %3 : vector<16x128xf32>
    %5 = arith.mulf %1, %1 : vector<16x128xf32>
    %cst_3 = arith.constant 5.000000e-01 : f32
    %6 = vector.broadcast %cst_3 : f32 to vector<16x128xf32>
    %7 = arith.mulf %6, %5 : vector<16x128xf32>
    %8 = arith.mulf %2, %2 : vector<16x128xf32>
    %9 = arith.select %4, %7, %8 : vector<16x128xi1>, vector<16x128xf32>
    %10 = vector.shape_cast %9 : vector<16x128xf32> to vector<1x16x128xf32>
    %cst_4 = arith.constant dense<0.000000e+00> : vector<1xf32>
    %11 = vector.multi_reduction <add>, %10, %cst_4 [1, 2] : vector<1x16x128xf32> to vector<1xf32>
    %12 = vector.shape_cast %11 : vector<1xf32> to vector<1x1x1xf32>
    %13 = vector.extract %12[0, 0, 0] : f32 from vector<1x1x1xf32>
    %c0_5 = arith.constant 0 : index
    %c0_6 = arith.constant 0 : index
    %14 = memref.load %arg3[%c0_5, %c0_6] : memref<1x1xf32, #tpu.memory_space<smem>>
    memref.store %13, %arg3[%c0_5, %c0_6] : memref<1x1xf32, #tpu.memory_space<smem>>
    return
  }
  func.func @transform_0(%arg0: i32) -> (i32, i32) {
    %c0_i32 = arith.constant 0 : i32
    %c0_i32_0 = arith.constant 0 : i32
    return %arg0, %c0_i32 : i32, i32
  }
  func.func @transform_1(%arg0: i32) -> (i32, i32) {
    %c0_i32 = arith.constant 0 : i32
    %c0_i32_0 = arith.constant 0 : i32
    return %arg0, %c0_i32 : i32, i32
  }
  func.func @transform_2(%arg0: i32) -> (i32, i32) {
    %c0_i32 = arith.constant 0 : i32
    %c0_i32_0 = arith.constant 0 : i32
    return %arg0, %c0_i32 : i32, i32
  }
}

</mosaic_0001>

<llo_original>
// kernel: tpu_custom_call.1
$region0: #{tpu_custom_call.1}
  #allocation0 [shape = 'u32[]', space=smem, size = 0x4, offset = 0x4, fixed_abs, tag = 'smem constant byte address 0x4 - core index']
  #allocation1 [shape = 'u32[72,128]{1,0:T(1,128)}', space=vmem, size = 0x9000, scoped, tag = 'internal scratch']
  %s0 = inlined_call_operand.hbm [shape: f32[16,128], index: 0, kind: input, shape index: {}]
  %s1 = inlined_call_operand.hbm [shape: f32[16,128], index: 1, kind: input, shape index: {}]
  %s2 = inlined_call_operand.hbm [shape: f32[1,1], index: 2, kind: output, shape index: {}]
  %s3 = sld [smem:[#allocation0]]
  $region26: #{tpu_custom_call.1} parent=0
    _
  %s5 = ssub.s32 1, %s3
  %s6 = scalar_select 0, %s5, %s3
  $region1: #{tpu_custom_call.1} parent=0
    #allocation2 [shape = 'u8[8192]{0}', space=vmem, size = 0x2000, scoped, tag = 'input window, operand 0, single buffered']
    #allocation3 [shape = 's32[1]{0}', space=sflag, size = 0x4, scoped, tag = 'scoped memory for tpu_custom_call.1']
    #allocation4 [shape = 's32[1]{0}', space=sflag, size = 0x4, scoped, tag = 'scoped memory for tpu_custom_call.1']
    #allocation5 [shape = 'u8[8192]{0}', space=vmem, size = 0x2000, scoped, tag = 'input window, operand 1, single buffered']
    #allocation6 [shape = 's32[1]{0}', space=sflag, size = 0x4, scoped, tag = 'scoped memory for tpu_custom_call.1']
    #allocation7 [shape = 'u8[512]{0}', space=smem, size = 0x200, scoped, tag = 'output window, operand 0, single buffered']
    %7 = vsyncpa [#allocation3], 0
    %8 = vsyncpa [#allocation6], 0
    %9 = vsyncpa [#allocation4], 0
    // Predicated region
    $region2: #{tpu_custom_call.1} parent=1 // pred_check
      _
    $region3: #{tpu_custom_call.1} parent=1 // pred_check_branch
      %11 = sbr.rel (0) target = $region5
    $region4: #{tpu_custom_call.1} parent=1 // pred_region
      %13 = vsyncadd [#allocation3], 0
      %s14 = sshll.u32 %s0, 4
      %s15 = int_to_ptr.hbm [resolvable:$true] %s14
      %s16 = sshll.u32 [#allocation2], 4
      %s17 = int_to_ptr.vmem [resolvable:$true] %s16
      %22 = dma.hbm_to_vmem [thread:$0]  %s15, 256, %s17, [#allocation3], 128, 128, 8
    $region5: #{tpu_custom_call.1} parent=1 // pred_fallthru
      _
    // Predicated region
    $region6: #{tpu_custom_call.1} parent=1 // pred_check
      _
    $region7: #{tpu_custom_call.1} parent=1 // pred_check_branch
      %24 = sbr.rel (0) target = $region9
    $region8: #{tpu_custom_call.1} parent=1 // pred_region
      %26 = vsyncadd [#allocation6], 0
      %s27 = sshll.u32 %s1, 4
      %s28 = int_to_ptr.hbm [resolvable:$true] %s27
      %s29 = sshll.u32 [#allocation5], 4
      %s30 = int_to_ptr.vmem [resolvable:$true] %s29
      %35 = dma.hbm_to_vmem [thread:$0]  %s28, 256, %s30, [#allocation6], 128, 128, 8
    $region9: #{tpu_custom_call.1} parent=1 // pred_fallthru
      _
    // Predicated region
    $region10: #{tpu_custom_call.1} parent=1 // pred_check
      _
    $region11: #{tpu_custom_call.1} parent=1 // pred_check_branch
      %37 = sbr.rel (0) target = $region13
    $region12: #{tpu_custom_call.1} parent=1 // pred_region
      %39 = dma.done [#allocation3], 256
    $region13: #{tpu_custom_call.1} parent=1 // pred_fallthru
      _
    // Predicated region
    $region14: #{tpu_custom_call.1} parent=1 // pred_check
      _
    $region15: #{tpu_custom_call.1} parent=1 // pred_check_branch
      %41 = sbr.rel (0) target = $region17
    $region16: #{tpu_custom_call.1} parent=1 // pred_region
      %43 = dma.done [#allocation6], 256
    $region17: #{tpu_custom_call.1} parent=1 // pred_fallthru
      _
    %v44 = vld [vmem:[#allocation5] sm:$0xff]
    %v45 = vld [vmem:[#allocation5 + $0x8] sm:$0xff]
    %v46 = vld [vmem:[#allocation2] sm:$0xff]
    %v47 = vld [vmem:[#allocation2 + $0x8] sm:$0xff]
    %v48 = vsub.f32 %v46, %v44
    %v49 = vsub.f32 %v47, %v45
    %vm50 = vcmp.eq.f32.partialorder %v44, 0.0
    %vm51 = vcmp.eq.f32.partialorder %v45, 0.0
    %v52 = vmul.f32 %v46, %v46
    %v53 = vmul.f32 %v47, %v47
    %v54 = vmul.f32 %v52, 0.5
    %v55 = vmul.f32 %v53, 0.5
    %v56 = vmul.f32 %v48, %v48
    %v57 = vmul.f32 %v49, %v49
    %v58 = vsel %vm50, %v54, %v56
    %v59 = vsel %vm51, %v55, %v57
    %v60 = vadd.f32 %v58, %v59
    %61 = vadd.xlane.f32.xlu0 %v60
    %v62 = vpop.xlane.xlu0 %61
    %v63 = vrot.slane %v62, 4
    %v64 = vadd.f32 %v62, %v63
    %v65 = vrot.slane %v64, 2
    %v66 = vadd.f32 %v64, %v65
    %v67 = vrot.slane %v66, 1
    %v68 = vadd.f32 %v66, %v67
    %s69 = vtos %v68
    %s70 = scalar_lea.smem [#allocation7], 0
    %71 = sst [smem:[%s70]] %s69
    // Predicated region
    $region18: #{tpu_custom_call.1} parent=1 // pred_check
      _
    $region19: #{tpu_custom_call.1} parent=1 // pred_check_branch
      %73 = sbr.rel (0) target = $region21
    $region20: #{tpu_custom_call.1} parent=1 // pred_region
      %75 = vsyncadd [#allocation4], 0
      %s77 = sshll.u32 %s2, 4
      %s78 = int_to_ptr.hbm [resolvable:$true] %s77
      %80 = dma.smem_to_hbm [#allocation7], 16, %s78, [#allocation4]
    $region21: #{tpu_custom_call.1} parent=1 // pred_fallthru
      _
    // Predicated region
    $region22: #{tpu_custom_call.1} parent=1 // pred_check
      _
    $region23: #{tpu_custom_call.1} parent=1 // pred_check_branch
      %82 = sbr.rel (0) target = $region25
    $region24: #{tpu_custom_call.1} parent=1 // pred_region
      %84 = dma.done [#allocation4], 16
    $region25: #{tpu_custom_call.1} parent=1 // pred_fallthru
      _
    %85 = sfence
    %86 = vsyncpa [#allocation3], 1
    %87 = vsyncpa [#allocation6], 1
    %88 = vsyncpa [#allocation4], 1

</llo_original>
